<compile_context>
chip_gen: v6e
topology: v6e:2x2x1
jax: 0.10.0
libtpu: 0.0.40
codegen_flags: <defaults>
</compile_context>

<pallas_src>
import functools

import jax
import jax.numpy as jnp
from jax.experimental import pallas as pl
from jax.experimental.pallas import tpu as pltpu


_LANES = 128
_SUBLANES = 8
_TILE_ROWS = 1024  # rows per block on the tiled (large-input) path


def _poly_cutoff_kernel(x_ref, o_ref, *, factor, p):
    # Load; compute in f32 for narrow dtypes (accuracy for x^p..x^(p+2);
    # on v5e the VPU has no bf16 ALUs anyway, so this costs nothing extra).
    x = x_ref[...]
    compute_dtype = jnp.float32 if x.dtype.itemsize < 4 else x.dtype
    x = x.astype(compute_dtype) * jnp.asarray(factor, compute_dtype)

    # x^p: integer-valued p -> exact integer powers (pure VALU, robust at x==0);
    # non-integer p -> a single transcendental power (EUP has its own VLIW slot,
    # so it overlaps with VALU/loads for free).
    if float(p).is_integer():
        xp = x ** int(p)
    else:
        xp = x ** jnp.asarray(p, compute_dtype)

    # Horner-factored envelope:
    #   1 - c0*x^p + c1*x^(p+1) - c2*x^(p+2)  ==  1 - x^p * (c0 - x*(c1 - c2*x))
    c0 = (p + 1.0) * (p + 2.0) / 2.0
    c1 = p * (p + 2.0)
    c2 = p * (p + 1.0) / 2.0
    out = 1.0 - xp * (c0 - x * (c1 - c2 * x))

    # Hard-zero past the cutoff with a select (no compare->convert->mul chain,
    # and no NaN from inf*0 if x^(p+2) overflows the compute dtype).
    out = jnp.where(x < 1.0, out, jnp.zeros_like(out))
    o_ref[...] = out.astype(o_ref.dtype)


def polynomial_cutoff(x, r_max: float = 10.0, p: float = 6.0):
    """Evaluate the polynomial cutoff elementwise on x (any shape)."""
    assert p >= 2.0
    factor = 1.0 / float(r_max)

    orig_shape = x.shape
    orig_dtype = x.dtype
    n = x.size

    kernel = functools.partial(_poly_cutoff_kernel, factor=factor, p=float(p))

    rows = -(-n // _LANES)  # ceil(n / 128)

    if rows <= _TILE_ROWS:
        # ---- Small path: whole array as a single VMEM block, no grid. ----
        rows_padded = max(_SUBLANES, -(-rows // _SUBLANES) * _SUBLANES)
        pad = rows_padded * _LANES - n

        x_flat = x.reshape(-1)
        if pad:
            x_flat = jnp.pad(x_flat, (0, pad))
        x_flat = x_flat.reshape(rows_padded, _LANES)

        out_flat = pl.pallas_call(
            kernel,
            out_shape=jax.ShapeDtypeStruct((rows_padded, _LANES), orig_dtype),
            in_specs=[pl.BlockSpec(memory_space=pltpu.MemorySpace.VMEM)],
            out_specs=pl.BlockSpec(memory_space=pltpu.MemorySpace.VMEM),
        )(x_flat)
    else:
        # ---- Large path: row-tiled, pipelined, megacore-parallel. ----
        rows_padded = -(-rows // _TILE_ROWS) * _TILE_ROWS
        pad = rows_padded * _LANES - n

        x_flat = x.reshape(-1)
        if pad:
            x_flat = jnp.pad(x_flat, (0, pad))
        x_flat = x_flat.reshape(rows_padded, _LANES)

        out_flat = pl.pallas_call(
            kernel,
            out_shape=jax.ShapeDtypeStruct((rows_padded, _LANES), orig_dtype),
            grid=(rows_padded // _TILE_ROWS,),
            in_specs=[pl.BlockSpec((_TILE_ROWS, _LANES), lambda i: (i, 0))],
            out_specs=pl.BlockSpec((_TILE_ROWS, _LANES), lambda i: (i, 0)),
            compiler_params=pltpu.CompilerParams(
                dimension_semantics=("parallel",)),
        )(x_flat)

    if pad:
        return out_flat.reshape(-1)[:n].reshape(orig_shape)
    return out_flat.reshape(orig_shape)


def _poly_cutoff_ref(x, factor, p=6.0):
    """Pure-JAX reference mirroring the PyTorch _poly_cutoff."""
    x = x * factor
    out = 1.0
    out = out - (p + 1.0) * (p + 2.0) / 2.0 * jnp.power(x, p)
    out = out + p * (p + 2.0) * jnp.power(x, p + 1.0)
    out = out - p * (p + 1.0) / 2.0 * jnp.power(x, p + 2.0)
    return out * (x < 1.0)


if __name__ == "__main__":
    key = jax.random.PRNGKey(0)
    r_max = 10.0
    p = 6.0

    # Input distances: (B, C, H, W) = (2, 4, 16, 16), in [0, 2*r_max] so the
    # cutoff mask (x < r_max) is exercised on both sides.
    x = jax.random.uniform(key, (2, 4, 16, 16), dtype=jnp.float32,
                           minval=0.0, maxval=2.0 * r_max)

    out = polynomial_cutoff(x, r_max=r_max, p=p)
    out = jax.block_until_ready(out)

    ref = _poly_cutoff_ref(x, 1.0 / r_max, p=p)
    assert out.shape == x.shape and out.dtype == x.dtype
    assert jnp.allclose(out, ref, atol=1e-5, rtol=1e-5)

    print("KERNEL_OK")
</pallas_src>

<mosaic_0001>
module attributes {stable_mosaic.version = 11 : i64} {
  func.func @_poly_cutoff_kernel(%arg0: memref<16x128xf32, #tpu.memory_space<vmem>>, %arg1: memref<16x128xf32, #tpu.memory_space<vmem>>) attributes {dimension_semantics = [], scalar_prefetch = 0 : i64, scratch_operands = 0 : i64, tpu.core_type = #tpu.core_type<tc>} {
    %c0 = arith.constant 0 : index
    %c0_0 = arith.constant 0 : index
    %0 = vector.load %arg0[%c0, %c0_0] : memref<16x128xf32, #tpu.memory_space<vmem>>, vector<16x128xf32>
    %cst = arith.constant 1.000000e-01 : f32
    %1 = vector.broadcast %cst : f32 to vector<16x128xf32>
    %2 = arith.mulf %0, %1 : vector<16x128xf32>
    %3 = arith.mulf %2, %2 : vector<16x128xf32>
    %4 = arith.mulf %3, %3 : vector<16x128xf32>
    %5 = arith.mulf %3, %4 : vector<16x128xf32>
    %cst_1 = arith.constant 2.100000e+01 : f32
    %6 = vector.broadcast %cst_1 : f32 to vector<16x128xf32>
    %7 = arith.mulf %6, %2 : vector<16x128xf32>
    %cst_2 = arith.constant 4.800000e+01 : f32
    %8 = vector.broadcast %cst_2 : f32 to vector<16x128xf32>
    %9 = arith.subf %8, %7 : vector<16x128xf32>
    %10 = arith.mulf %2, %9 : vector<16x128xf32>
    %cst_3 = arith.constant 2.800000e+01 : f32
    %11 = vector.broadcast %cst_3 : f32 to vector<16x128xf32>
    %12 = arith.subf %11, %10 : vector<16x128xf32>
    %13 = arith.mulf %5, %12 : vector<16x128xf32>
    %cst_4 = arith.constant 1.000000e+00 : f32
    %14 = vector.broadcast %cst_4 : f32 to vector<16x128xf32>
    %15 = arith.subf %14, %13 : vector<16x128xf32>
    %cst_5 = arith.constant 1.000000e+00 : f32
    %16 = vector.broadcast %cst_5 : f32 to vector<16x128xf32>
    %17 = arith.cmpf olt, %2, %16 : vector<16x128xf32>
    %cst_6 = arith.constant 0.000000e+00 : f32
    %18 = vector.broadcast %cst_6 : f32 to vector<16x128xf32>
    %19 = arith.select %17, %15, %18 : vector<16x128xi1>, vector<16x128xf32>
    %c0_7 = arith.constant 0 : index
    %c0_8 = arith.constant 0 : index
    %20 = vector.load %arg1[%c0_7, %c0_8] : memref<16x128xf32, #tpu.memory_space<vmem>>, vector<16x128xf32>
    tpu.vector_store %arg1[%c0_7, %c0_8], %19 {strides = array<i32>} : memref<16x128xf32, #tpu.memory_space<vmem>>, vector<16x128xf32>,
    return
  }
}

</mosaic_0001>

<llo_original>
// kernel: tpu_custom_call.1
$region0: #{tpu_custom_call.1}
  #allocation0 [shape = 'u32[]', space=smem, size = 0x4, offset = 0x4, fixed_abs, tag = 'smem constant byte address 0x4 - core index']
  #allocation1 [shape = 'u32[144,128]{1,0:T(1,128)}', space=vmem, size = 0x12000, scoped, tag = 'internal scratch']
  %s0 = inlined_call_operand.hbm [shape: f32[16,128], index: 0, kind: input, shape index: {}]
  %s1 = inlined_call_operand.hbm [shape: f32[16,128], index: 1, kind: output, shape index: {}]
  %s2 = sld [smem:[#allocation0]]
  $region18: #{tpu_custom_call.1} parent=0
    _
  %s4 = ssub.s32 1, %s2
  %s5 = scalar_select 0, %s4, %s2
  $region1: #{tpu_custom_call.1} parent=0
    #allocation2 [shape = 'u8[8192]{0}', space=vmem, size = 0x2000, scoped, tag = 'input window, operand 0, single buffered']
    #allocation3 [shape = 's32[1]{0}', space=sflag, size = 0x4, scoped, tag = 'scoped memory for tpu_custom_call.1']
    #allocation4 [shape = 's32[1]{0}', space=sflag, size = 0x4, scoped, tag = 'scoped memory for tpu_custom_call.1']
    #allocation5 [shape = 'u8[8192]{0}', space=vmem, size = 0x2000, scoped, tag = 'output window, operand 0, single buffered']
    %6 = vsyncpa [#allocation3], 0
    %7 = vsyncpa [#allocation4], 0
    // Predicated region
    $region2: #{tpu_custom_call.1} parent=1 // pred_check
      _
    $region3: #{tpu_custom_call.1} parent=1 // pred_check_branch
      %9 = sbr.rel (0) target = $region5
    $region4: #{tpu_custom_call.1} parent=1 // pred_region
      %s11 = ssub.s32 256, 256
      %12 = vsyncadd [#allocation3], %s11
      %s13 = sshll.u32 [#allocation2], 4
      %s14 = int_to_ptr.vmem [resolvable:$true] %s13
      %19 = dma.hbm_to_vmem [thread:$0]  %s0, 256, %s14, [#allocation3], 128, 128, 8
    $region5: #{tpu_custom_call.1} parent=1 // pred_fallthru
      _
    // Predicated region
    $region6: #{tpu_custom_call.1} parent=1 // pred_check
      _
    $region7: #{tpu_custom_call.1} parent=1 // pred_check_branch
      %21 = sbr.rel (0) target = $region9
    $region8: #{tpu_custom_call.1} parent=1 // pred_region
      %22 = dma.done [#allocation3], 256
    $region9: #{tpu_custom_call.1} parent=1 // pred_fallthru
      _
    %v23 = vld [vmem:[#allocation2] sm:$0xff]
    %v24 = vld [vmem:[#allocation2 + $0x8] sm:$0xff]
    %v25 = vmul.f32 %v23, 0.1
    %v26 = vmul.f32 %v24, 0.1
    %v27 = vmul.f32 %v25, %v25
    %v28 = vmul.f32 %v26, %v26
    %v29 = vmul.f32 %v27, %v27
    %v30 = vmul.f32 %v28, %v28
    %v31 = vmul.f32 %v27, %v29
    %v32 = vmul.f32 %v28, %v30
    %v33 = vmul.f32 %v25, 21.0
    %v34 = vmul.f32 %v26, 21.0
    %v35 = vsub.f32 48.0, %v33
    %v36 = vsub.f32 48.0, %v34
    %v37 = vmul.f32 %v25, %v35
    %v38 = vmul.f32 %v26, %v36
    %v39 = vsub.f32 28.0, %v37
    %v40 = vsub.f32 28.0, %v38
    %v41 = vmul.f32 %v31, %v39
    %v42 = vmul.f32 %v32, %v40
    %v43 = vsub.f32 1.0, %v41
    %v44 = vsub.f32 1.0, %v42
    %vm45 = vcmp.lt.f32.partialorder %v25, 1.0
    %vm46 = vcmp.lt.f32.partialorder %v26, 1.0
    %v47 = vsel %vm45, %v43, 0.0
    %v48 = vsel %vm46, %v44, 0.0
    %49 = vst [vmem:[#allocation5] sm:$0xff] %v47
    %50 = vst [vmem:[#allocation5 + $0x8] sm:$0xff] %v48
    // Predicated region
    $region10: #{tpu_custom_call.1} parent=1 // pred_check
      _
    $region11: #{tpu_custom_call.1} parent=1 // pred_check_branch
      %52 = sbr.rel (0) target = $region13
    $region12: #{tpu_custom_call.1} parent=1 // pred_region
      %s54 = ssub.s32 256, 256
      %55 = vsyncadd [#allocation4], %s54
      %s56 = sshll.u32 [#allocation5], 4
      %s57 = int_to_ptr.vmem [resolvable:$true] %s56
      %62 = dma.vmem_to_hbm [thread:$0]  %s57, 256, %s1, [#allocation4], 128, 128, 8
    $region13: #{tpu_custom_call.1} parent=1 // pred_fallthru
      _
    // Predicated region
    $region14: #{tpu_custom_call.1} parent=1 // pred_check
      _
    $region15: #{tpu_custom_call.1} parent=1 // pred_check_branch
      %64 = sbr.rel (0) target = $region17
    $region16: #{tpu_custom_call.1} parent=1 // pred_region
      %65 = dma.done [#allocation4], 256
    $region17: #{tpu_custom_call.1} parent=1 // pred_fallthru
      _
    %66 = vsyncpa [#allocation3], 1
    %67 = vsyncpa [#allocation4], 1

</llo_original>
